<compile_context>
chip_gen: v6e
topology: v6e:2x2x1
jax: 0.10.0
libtpu: 0.0.40
codegen_flags: <defaults>
</compile_context>

<pallas_src>
import functools

import jax
import jax.numpy as jnp
from jax import lax
from jax.experimental import pallas as pl
from jax.experimental.pallas import tpu as pltpu


def cosface_kernel(x_ref, e_ref, wt_ref, y_ref, out_ref, emb_ref, *, s, m):
    """Grid = (B tiles, C tiles); C is the innermost axis.

    NOTE: caching emb_n in `emb_ref` at j == 0 relies on the C axis being the
    innermost ("arbitrary") grid axis.  Do not reorder the grid or mark the C
    axis "parallel" -- the scratch would then hold a stale batch tile.
    """
    j = pl.program_id(1)

    # Embedding matmul + L2 normalization only once per B tile; the normalized
    # rows persist in VMEM scratch (compute dtype) while we sweep the C tiles.
    @pl.when(j == 0)
    def _():
        emb = jnp.dot(x_ref[...], e_ref[...],
                      preferred_element_type=jnp.float32)            # (TM, D)
        # F.normalize: v / max(||v||, 1e-12) == v * rsqrt(max(||v||^2, 1e-24))
        nsq = jnp.sum(emb * emb, axis=-1, keepdims=True)
        emb_n = emb * lax.rsqrt(jnp.maximum(nsq, jnp.float32(1e-24)))
        emb_ref[...] = emb_n.astype(emb_ref.dtype)

    # Cosine logits for this C tile: (TM, D) @ (D, TN).  Both operands are in
    # compute_dtype (bf16 by default -> native MXU); accumulate in f32.
    # W_n is pre-normalized and pre-transposed in the wrapper (no vxpose here).
    logits = jnp.dot(emb_ref[...], wt_ref[...],
                     preferred_element_type=jnp.float32)              # (TM, TN)

    # one_hot margin + scale, folded: out = s*logits - (s*m)*one_hot.
    # Per-tile column offset is applied to the (TM,1) label column, not the
    # full (TM,TN) iota.
    tn = out_ref.shape[-1]
    col = lax.broadcasted_iota(jnp.int32, logits.shape, 1)
    match = col == (y_ref[...] - j * tn)                              # y: (TM,1)
    scaled = jnp.float32(s) * logits
    out_ref[...] = jnp.where(match, scaled - jnp.float32(s * m),
                             scaled).astype(out_ref.dtype)


def cosface_forward(x, e, w, y, *, s, m,
                    block_b=512, block_c=1024,
                    compute_dtype=jnp.bfloat16,
                    out_dtype=jnp.float32):
    B, F = x.shape
    F2, D = e.shape
    C, D2 = w.shape
    assert F2 == F and D2 == D

    # ---- batch-independent precompute (hoisted out of the kernel) ----------
    # Row-normalize W and transpose to (D, C) so the kernel contracts on the
    # last dim of emb_n without an in-kernel transpose; stream it in
    # compute_dtype (bf16 by default) to halve the dominant HBM read.
    w32 = w.astype(jnp.float32)
    w_n = w32 / jnp.maximum(
        jnp.sqrt(jnp.sum(w32 * w32, axis=-1, keepdims=True)), 1e-12)
    w_n_t = w_n.T.astype(compute_dtype)                       # (D, C)

    # Labels as a tiny (B, 1) int32 VMEM tile.
    y2 = y.reshape(B, 1).astype(jnp.int32)

    # ---- tile selection -----------------------------------------------------
    tm = min(block_b, B)
    # Keep >= 2 B tiles when the batch is big enough so the "parallel" B axis
    # can shard across v7x's two TensorCores (no effect on 1-TC v5e/v6e).
    if B // tm < 2 and B >= 256 and (B // 2) % 8 == 0:
        tm = B // 2
    tn = min(block_c, C)
    assert B % tm == 0 and C % tn == 0, "pad B / n_keyword to tile multiples"

    cd = jnp.dtype(compute_dtype).itemsize
    od = jnp.dtype(out_dtype).itemsize

    # ---- explicit VMEM budget (double-buffered pipeline) --------------------
    #   2*(x tile) + 2*(emb weights) + 2*(W_n^T tile) + 2*(out tile)
    #   + 2*(labels) + emb_n scratch
    # (x / e drop to a single buffer when pl.Buffered(1) is honored below.)
    vmem_budget = (2 * tm * F * 4 + 2 * F * D * 4
                   + 2 * D * tn * cd + 2 * tm * tn * od
                   + 2 * tm * 4 + tm * D * cd)
    vmem_limit = int(min(100 * 1024 * 1024,
                         max(vmem_budget + (4 << 20), 32 << 20)))

    cost = pl.CostEstimate(
        flops=2 * B * F * D + 2 * B * C * D,
        transcendentals=0,
        bytes_accessed=(B * F * 4 + F * D * 4
                        + (B // tm) * C * D * cd    # W_n^T re-read per B tile
                        + B * 4 + B * C * od))

    kernel = functools.partial(cosface_kernel, s=float(s), m=float(m))
    out_shape = jax.ShapeDtypeStruct((B, C), out_dtype)

    def build(single_buffer_invariants):
        # x / e blocks are invariant along the inner C axis; their second
        # pipeline buffer is dead VMEM weight.
        pm = ({"pipeline_mode": pl.Buffered(1)}
              if single_buffer_invariants else {})
        return pl.pallas_call(
            kernel,
            out_shape=out_shape,
            grid_spec=pltpu.PrefetchScalarGridSpec(
                num_scalar_prefetch=0,
                grid=(B // tm, C // tn),
                in_specs=[
                    pl.BlockSpec((tm, F), lambda i, j: (i, 0), **pm),  # x tile
                    pl.BlockSpec((F, D), lambda i, j: (0, 0), **pm),   # emb W
                    pl.BlockSpec((D, tn), lambda i, j: (0, j)),        # W_n^T
                    pl.BlockSpec((tm, 1), lambda i, j: (i, 0)),        # labels
                ],
                out_specs=pl.BlockSpec((tm, tn), lambda i, j: (i, j)),
                scratch_shapes=[pltpu.VMEM((tm, D), compute_dtype)],
            ),
            compiler_params=pltpu.CompilerParams(
                dimension_semantics=("parallel", "arbitrary"),
                vmem_limit_bytes=vmem_limit),
            cost_estimate=cost,
        )

    args = (x.astype(jnp.float32), e.astype(jnp.float32), w_n_t, y2)
    try:
        return build(True)(*args)
    except Exception:
        # Fallback if this JAX build rejects pipeline_mode=pl.Buffered(1);
        # default double-buffering is correct, just uses a bit more VMEM.
        return build(False)(*args)


def cosface_reference(x, e, w, y, *, s, m):
    emb = x @ e
    emb_n = emb / jnp.maximum(
        jnp.linalg.norm(emb, axis=-1, keepdims=True), 1e-12)
    w_n = w / jnp.maximum(jnp.linalg.norm(w, axis=-1, keepdims=True), 1e-12)
    logits = emb_n @ w_n.T
    one_hot = jax.nn.one_hot(y, w.shape[0], dtype=logits.dtype)
    return s * (logits - m * one_hot)


if __name__ == "__main__":
    # Small shapes (n_embed = 128, n_keyword = 256, s = 30, m = 0.40); block_b /
    # block_c are shrunk so the (2, 2) grid exercises the scratch reuse, the
    # per-tile label offset and the B-tile pipeline boundary.
    # TODO(synk): production benchmarking must use real B / n_keyword; at these
    # sizes the MXU is underfilled and tiling conclusions must be re-derived.
    B, F, D, C = 16, 32, 128, 256
    s, m = 30.0, 0.40

    key = jax.random.PRNGKey(0)
    k_x, k_e, k_w, k_y = jax.random.split(key, 4)

    x = jax.random.normal(k_x, (B, F), dtype=jnp.float32)
    # embedding sub-model parameters (deterministic synthetic init)
    e = 0.05 * jax.random.normal(k_e, (F, D), dtype=jnp.float32)
    # nn.init.xavier_uniform_ on W of shape (n_keyword, n_embed)
    limit = (6.0 / (C + D)) ** 0.5
    w = jax.random.uniform(k_w, (C, D), dtype=jnp.float32,
                           minval=-limit, maxval=limit)
    y = jax.random.randint(k_y, (B,), 0, C, dtype=jnp.int32)

    ref = cosface_reference(x, e, w, y, s=s, m=m)

    # Default (bf16 matmul operands) production path — loose parity.
    out = jax.block_until_ready(
        cosface_forward(x, e, w, y, s=s, m=m, block_b=8, block_c=128))
    assert out.shape == (B, C)
    assert jnp.allclose(out, ref, atol=1e-1, rtol=1e-2), "bf16 path mismatch"

    # Strict-parity f32 path.
    out_f32 = jax.block_until_ready(
        cosface_forward(x, e, w, y, s=s, m=m, block_b=8, block_c=128,
                        compute_dtype=jnp.float32))
    assert jnp.allclose(out_f32, ref, atol=1e-4, rtol=1e-4), "f32 path mismatch"

    print("KERNEL_OK")
</pallas_src>

<mosaic_0001>
module attributes {stable_mosaic.version = 11 : i64} {
  func.func @cosface_kernel(%arg0: i32, %arg1: i32, %arg2: memref<8x32xf32, #tpu.memory_space<vmem>>, %arg3: memref<32x128xf32, #tpu.memory_space<vmem>>, %arg4: memref<128x128xbf16, #tpu.memory_space<vmem>>, %arg5: memref<8x1xi32, #tpu.memory_space<vmem>>, %arg6: memref<8x128xf32, #tpu.memory_space<vmem>>, %arg7: memref<8x128xbf16, #tpu.memory_space<vmem>>) attributes {dimension_semantics = [#tpu.dimension_semantics<parallel>, #tpu.dimension_semantics<arbitrary>], iteration_bounds = array<i64: 2, 2>, scalar_prefetch = 0 : i64, scratch_operands = 1 : i64, tpu.core_type = #tpu.core_type<tc>, window_params = [{pipeline_mode = #tpu.pipeline_mode<synchronous>, transform_indices = @transform_0, window_bounds = array<i64: 8, 32>}, {pipeline_mode = #tpu.pipeline_mode<synchronous>, transform_indices = @transform_1, window_bounds = array<i64: 32, 128>}, {transform_indices = @transform_2, window_bounds = array<i64: 128, 128>}, {transform_indices = @transform_3, window_bounds = array<i64: 8, 1>}, {transform_indices = @transform_4, window_bounds = array<i64: 8, 128>}]} {
    %c0_i32 = arith.constant 0 : i32
    %0 = arith.cmpi eq, %arg1, %c0_i32 : i32
    %1 = arith.extui %0 : i1 to i32
    %c0_i32_0 = arith.constant 0 : i32
    %2 = arith.cmpi ne, %1, %c0_i32_0 : i32
    scf.if %2 {
      %c0_10 = arith.constant 0 : index
      %c0_11 = arith.constant 0 : index
      %19 = vector.load %arg2[%c0_10, %c0_11] : memref<8x32xf32, #tpu.memory_space<vmem>>, vector<8x32xf32>
      %c0_12 = arith.constant 0 : index
      %c0_13 = arith.constant 0 : index
      %20 = vector.load %arg3[%c0_12, %c0_13] : memref<32x128xf32, #tpu.memory_space<vmem>>, vector<32x128xf32>
      %cst_14 = arith.constant dense<0.000000e+00> : vector<8x128xf32>
      %21 = tpu.matmul %19, %20, %cst_14 {dimension_numbers = #tpu.dot_dimension_numbers<[1], [0], [0], [1], [0, 0, 1, 1], [], []>} : vector<8x32xf32>, vector<32x128xf32>, vector<8x128xf32> -> vector<8x128xf32>
      %22 = arith.mulf %21, %21 : vector<8x128xf32>
      %cst_15 = arith.constant dense<0.000000e+00> : vector<8xf32>
      %23 = vector.multi_reduction <add>, %22, %cst_15 [1] : vector<8x128xf32> to vector<8xf32>
      %24 = vector.shape_cast %23 : vector<8xf32> to vector<8x1xf32>
      %cst_16 = arith.constant 1.000000e-24 : f32
      %25 = vector.broadcast %cst_16 : f32 to vector<8x1xf32>
      %26 = arith.maximumf %24, %25 : vector<8x1xf32>
      %27 = math.rsqrt %26 : vector<8x1xf32>
      %28 = vector.broadcast %27 : vector<8x1xf32> to vector<8x128xf32>
      %29 = arith.mulf %21, %28 : vector<8x128xf32>
      %30 = arith.truncf %29 : vector<8x128xf32> to vector<8x128xbf16>
      %c0_17 = arith.constant 0 : index
      %c0_18 = arith.constant 0 : index
      %31 = vector.load %arg7[%c0_17, %c0_18] : memref<8x128xbf16, #tpu.memory_space<vmem>>, vector<8x128xbf16>
      tpu.vector_store %arg7[%c0_17, %c0_18], %30 {strides = array<i32>} : memref<8x128xbf16, #tpu.memory_space<vmem>>, vector<8x128xbf16>,
    } else {
    }
    %c0 = arith.constant 0 : index
    %c0_1 = arith.constant 0 : index
    %3 = vector.load %arg7[%c0, %c0_1] : memref<8x128xbf16, #tpu.memory_space<vmem>>, vector<8x128xbf16>
    %c0_2 = arith.constant 0 : index
    %c0_3 = arith.constant 0 : index
    %4 = vector.load %arg4[%c0_2, %c0_3] : memref<128x128xbf16, #tpu.memory_space<vmem>>, vector<128x128xbf16>
    %cst = arith.constant dense<0.000000e+00> : vector<8x128xf32>
    %5 = tpu.matmul %3, %4, %cst {dimension_numbers = #tpu.dot_dimension_numbers<[1], [0], [0], [1], [0, 0, 1, 1], [], []>} : vector<8x128xbf16>, vector<128x128xbf16>, vector<8x128xf32> -> vector<8x128xf32>
    %6 = tpu.iota {dimensions = array<i32: 1>} : vector<8x128xi32>
    %c0_4 = arith.constant 0 : index
    %c0_5 = arith.constant 0 : index
    %7 = vector.load %arg5[%c0_4, %c0_5] : memref<8x1xi32, #tpu.memory_space<vmem>>, vector<8x1xi32>
    %c128_i32 = arith.constant 128 : i32
    %8 = arith.muli %arg1, %c128_i32 : i32
    %9 = vector.broadcast %8 : i32 to vector<8x1xi32>
    %10 = arith.subi %7, %9 : vector<8x1xi32>
    %11 = vector.broadcast %10 : vector<8x1xi32> to vector<8x128xi32>
    %12 = arith.cmpi eq, %6, %11 : vector<8x128xi32>
    %cst_6 = arith.constant 3.000000e+01 : f32
    %13 = vector.broadcast %cst_6 : f32 to vector<8x128xf32>
    %14 = arith.mulf %13, %5 : vector<8x128xf32>
    %cst_7 = arith.constant 1.200000e+01 : f32
    %15 = vector.broadcast %cst_7 : f32 to vector<8x128xf32>
    %16 = arith.subf %14, %15 : vector<8x128xf32>
    %17 = arith.select %12, %16, %14 : vector<8x128xi1>, vector<8x128xf32>
    %c0_8 = arith.constant 0 : index
    %c0_9 = arith.constant 0 : index
    %18 = vector.load %arg6[%c0_8, %c0_9] : memref<8x128xf32, #tpu.memory_space<vmem>>, vector<8x128xf32>
    tpu.vector_store %arg6[%c0_8, %c0_9], %17 {strides = array<i32>} : memref<8x128xf32, #tpu.memory_space<vmem>>, vector<8x128xf32>,
    return
  }
  func.func @transform_0(%arg0: i32, %arg1: i32) -> (i32, i32) {
    %c0_i32 = arith.constant 0 : i32
    %c0_i32_0 = arith.constant 0 : i32
    return %arg0, %c0_i32 : i32, i32
  }
  func.func @transform_1(%arg0: i32, %arg1: i32) -> (i32, i32) {
    %c0_i32 = arith.constant 0 : i32
    %c0_i32_0 = arith.constant 0 : i32
    %c0_i32_1 = arith.constant 0 : i32
    return %c0_i32, %c0_i32_0 : i32, i32
  }
  func.func @transform_2(%arg0: i32, %arg1: i32) -> (i32, i32) {
    %c0_i32 = arith.constant 0 : i32
    %c0_i32_0 = arith.constant 0 : i32
    return %c0_i32, %arg1 : i32, i32
  }
  func.func @transform_3(%arg0: i32, %arg1: i32) -> (i32, i32) {
    %c0_i32 = arith.constant 0 : i32
    %c0_i32_0 = arith.constant 0 : i32
    return %arg0, %c0_i32 : i32, i32
  }
  func.func @transform_4(%arg0: i32, %arg1: i32) -> (i32, i32) {
    %c0_i32 = arith.constant 0 : i32
    return %arg0, %arg1 : i32, i32
  }
}

module attributes {stable_mosaic.version = 11 : i64} {
  func.func @cosface_kernel(%arg0: i32, %arg1: i32, %arg2: memref<8x32xf32, #tpu.memory_space<vmem>>, %arg3: memref<32x128xf32, #tpu.memory_space<vmem>>, %arg4: memref<128x128xbf16, #tpu.memory_space<vmem>>, %arg5: memref<8x1xi32, #tpu.memory_space<vmem>>, %arg6: memref<8x128xf32, #tpu.memory_space<vmem>>, %arg7: memref<8x128xbf16, #tpu.memory_space<vmem>>) attributes {dimension_semantics = [#tpu.dimension_semantics<parallel>, #tpu.dimension_semantics<arbitrary>], iteration_bounds = array<i64: 2, 2>, scalar_prefetch = 0 : i64, scratch_operands = 1 : i64, tpu.core_type = #tpu.core_type<tc>, window_params = [{transform_indices = @transform_0, window_bounds = array<i64: 8, 32>}, {pipeline_mode = #tpu.pipeline_mode<synchronous>, transform_indices = @transform_1, window_bounds = array<i64: 32, 128>}, {transform_indices = @transform_2, window_bounds = array<i64: 128, 128>}, {transform_indices = @transform_3, window_bounds = array<i64: 8, 1>}, {transform_indices = @transform_4, window_bounds = array<i64: 8, 128>}]} {
    %c0_i32 = arith.constant 0 : i32
    %0 = arith.cmpi eq, %arg1, %c0_i32 : i32
    %1 = arith.extui %0 : i1 to i32
    %c0_i32_0 = arith.constant 0 : i32
    %2 = arith.cmpi ne, %1, %c0_i32_0 : i32
    scf.if %2 {
      %c0_10 = arith.constant 0 : index
      %c0_11 = arith.constant 0 : index
      %19 = vector.load %arg2[%c0_10, %c0_11] : memref<8x32xf32, #tpu.memory_space<vmem>>, vector<8x32xf32>
      %c0_12 = arith.constant 0 : index
      %c0_13 = arith.constant 0 : index
      %20 = vector.load %arg3[%c0_12, %c0_13] : memref<32x128xf32, #tpu.memory_space<vmem>>, vector<32x128xf32>
      %cst_14 = arith.constant dense<0.000000e+00> : vector<8x128xf32>
      %21 = tpu.matmul %19, %20, %cst_14 {dimension_numbers = #tpu.dot_dimension_numbers<[1], [0], [0], [1], [0, 0, 1, 1], [], []>} : vector<8x32xf32>, vector<32x128xf32>, vector<8x128xf32> -> vector<8x128xf32>
      %22 = arith.mulf %21, %21 : vector<8x128xf32>
      %cst_15 = arith.constant dense<0.000000e+00> : vector<8xf32>
      %23 = vector.multi_reduction <add>, %22, %cst_15 [1] : vector<8x128xf32> to vector<8xf32>
      %24 = vector.shape_cast %23 : vector<8xf32> to vector<8x1xf32>
      %cst_16 = arith.constant 1.000000e-24 : f32
      %25 = vector.broadcast %cst_16 : f32 to vector<8x1xf32>
      %26 = arith.maximumf %24, %25 : vector<8x1xf32>
      %27 = math.rsqrt %26 : vector<8x1xf32>
      %28 = vector.broadcast %27 : vector<8x1xf32> to vector<8x128xf32>
      %29 = arith.mulf %21, %28 : vector<8x128xf32>
      %30 = arith.truncf %29 : vector<8x128xf32> to vector<8x128xbf16>
      %c0_17 = arith.constant 0 : index
      %c0_18 = arith.constant 0 : index
      %31 = vector.load %arg7[%c0_17, %c0_18] : memref<8x128xbf16, #tpu.memory_space<vmem>>, vector<8x128xbf16>
      tpu.vector_store %arg7[%c0_17, %c0_18], %30 {strides = array<i32>} : memref<8x128xbf16, #tpu.memory_space<vmem>>, vector<8x128xbf16>,
    } else {
    }
    %c0 = arith.constant 0 : index
    %c0_1 = arith.constant 0 : index
    %3 = vector.load %arg7[%c0, %c0_1] : memref<8x128xbf16, #tpu.memory_space<vmem>>, vector<8x128xbf16>
    %c0_2 = arith.constant 0 : index
    %c0_3 = arith.constant 0 : index
    %4 = vector.load %arg4[%c0_2, %c0_3] : memref<128x128xbf16, #tpu.memory_space<vmem>>, vector<128x128xbf16>
    %cst = arith.constant dense<0.000000e+00> : vector<8x128xf32>
    %5 = tpu.matmul %3, %4, %cst {dimension_numbers = #tpu.dot_dimension_numbers<[1], [0], [0], [1], [0, 0, 1, 1], [], []>} : vector<8x128xbf16>, vector<128x128xbf16>, vector<8x128xf32> -> vector<8x128xf32>
    %6 = tpu.iota {dimensions = array<i32: 1>} : vector<8x128xi32>
    %c0_4 = arith.constant 0 : index
    %c0_5 = arith.constant 0 : index
    %7 = vector.load %arg5[%c0_4, %c0_5] : memref<8x1xi32, #tpu.memory_space<vmem>>, vector<8x1xi32>
    %c128_i32 = arith.constant 128 : i32
    %8 = arith.muli %arg1, %c128_i32 : i32
    %9 = vector.broadcast %8 : i32 to vector<8x1xi32>
    %10 = arith.subi %7, %9 : vector<8x1xi32>
    %11 = vector.broadcast %10 : vector<8x1xi32> to vector<8x128xi32>
    %12 = arith.cmpi eq, %6, %11 : vector<8x128xi32>
    %cst_6 = arith.constant 3.000000e+01 : f32
    %13 = vector.broadcast %cst_6 : f32 to vector<8x128xf32>
    %14 = arith.mulf %13, %5 : vector<8x128xf32>
    %cst_7 = arith.constant 1.200000e+01 : f32
    %15 = vector.broadcast %cst_7 : f32 to vector<8x128xf32>
    %16 = arith.subf %14, %15 : vector<8x128xf32>
    %17 = arith.select %12, %16, %14 : vector<8x128xi1>, vector<8x128xf32>
    %c0_8 = arith.constant 0 : index
    %c0_9 = arith.constant 0 : index
    %18 = vector.load %arg6[%c0_8, %c0_9] : memref<8x128xf32, #tpu.memory_space<vmem>>, vector<8x128xf32>
    tpu.vector_store %arg6[%c0_8, %c0_9], %17 {strides = array<i32>} : memref<8x128xf32, #tpu.memory_space<vmem>>, vector<8x128xf32>,
    return
  }
  func.func @transform_0(%arg0: i32, %arg1: i32) -> (i32, i32) {
    %c0_i32 = arith.constant 0 : i32
    %c0_i32_0 = arith.constant 0 : i32
    return %arg0, %c0_i32 : i32, i32
  }
  func.func @transform_1(%arg0: i32, %arg1: i32) -> (i32, i32) {
    %c0_i32 = arith.constant 0 : i32
    %c0_i32_0 = arith.constant 0 : i32
    %c0_i32_1 = arith.constant 0 : i32
    return %c0_i32, %c0_i32_0 : i32, i32
  }
  func.func @transform_2(%arg0: i32, %arg1: i32) -> (i32, i32) {
    %c0_i32 = arith.constant 0 : i32
    %c0_i32_0 = arith.constant 0 : i32
    return %c0_i32, %arg1 : i32, i32
  }
  func.func @transform_3(%arg0: i32, %arg1: i32) -> (i32, i32) {
    %c0_i32 = arith.constant 0 : i32
    %c0_i32_0 = arith.constant 0 : i32
    return %arg0, %c0_i32 : i32, i32
  }
  func.func @transform_4(%arg0: i32, %arg1: i32) -> (i32, i32) {
    %c0_i32 = arith.constant 0 : i32
    return %arg0, %arg1 : i32, i32
  }
}

</mosaic_0001>

<llo_original>
// kernel: tpu_custom_call.1
$region0: #{tpu_custom_call.1}
  #allocation0 [shape = 'u32[]', space=smem, size = 0x4, offset = 0x4, fixed_abs, tag = 'smem constant byte address 0x4 - core index']
  #allocation1 [shape = 'u32[144,128]{1,0:T(1,128)}', space=vmem, size = 0x12000, scoped, tag = 'internal scratch']
  #allocation2 [shape = 'bf16[8,128]{1,0:T(8,128)(2,1)}', space=vmem, size = 0x800, scoped, tag = 'scratch operand']
  %s0 = inlined_call_operand.vmem [shape: f32[16,32], index: 0, kind: input, shape index: {}]
  %s1 = inlined_call_operand.hbm [shape: f32[32,128], index: 1, kind: input, shape index: {}]
  %s2 = inlined_call_operand.hbm [shape: bf16[128,256], index: 2, kind: input, shape index: {}]
  %s3 = inlined_call_operand.vmem [shape: s32[16,1], index: 3, kind: input, shape index: {}]
  %s4 = inlined_call_operand.hbm [shape: f32[16,256], index: 4, kind: output, shape index: {}]
  %s5 = sld [smem:[#allocation0]]
  $region61: #{tpu_custom_call.1} parent=0
    _
  %s7 = ssub.s32 1, %s5
  %s8 = scalar_select 0, %s7, %s5
  $region1: #{tpu_custom_call.1} parent=0
    #allocation3 [shape = 'u8[16384]{0}', space=vmem, size = 0x4000, scoped, tag = 'input window, operand 1, single buffered']
    #allocation4 [shape = 's32[2]{0}', space=sflag, size = 0x8, scoped, tag = 'scoped memory for tpu_custom_call.1']
    #allocation5 [shape = 's32[2]{0}', space=sflag, size = 0x8, scoped, tag = 'scoped memory for tpu_custom_call.1']
    #allocation6 [shape = 'u8[65536]{0}', space=vmem, size = 0x10000, scoped, tag = 'input window, operand 2']
    #allocation7 [shape = 's32[2]{0}', space=sflag, size = 0x8, scoped, tag = 'scoped memory for tpu_custom_call.1']
    #allocation8 [shape = 'u8[8192]{0}', space=vmem, size = 0x2000, scoped, tag = 'output window, operand 0']
    %9 = vsyncpa [#allocation4], 0
    %10 = vsyncpa [#allocation7], 0
    %s11 = scalar_lea.sflag [#allocation7], 1
    %12 = vsyncpa %s11, 0
    %13 = vsyncpa [#allocation5], 0
    %s14 = scalar_lea.sflag [#allocation5], 1
    %15 = vsyncpa %s14, 0
    loop: start=0, step=1, limit=6
    $region2: #{tpu_custom_call.1} parent=1 // loop_pre_header
      _
    $region3: #{tpu_custom_call.1} parent=1 // loop_header
      %s17 = sphi 0, %s21
      %p18 = scmp.ge.s32.totalorder %s17, 6
      %s24 = sphi 0, %s36
      %s25 = sphi 0, %s32
      %s26 = sphi 0, %s24
      %s27 = sphi 0, %s25
      %s28 = sphi 0, %s26
      %s29 = sphi 0, %s27
      %s39 = sphi 0, %s41
      %s42 = sphi 0, %s39
      %s43 = sphi 0, %s42
      %s59 = sphi 0, %s43
      %s63 = sphi 0, %s63
      %s65 = sphi 0, %s63
      %s66 = sphi 0, %s65
      %s80 = sphi 0, %s66
      %s86 = sphi 0, %s88
      %s89 = sphi 0, %s86
      %s90 = sphi 0, %s89
      %s106 = sphi 0, %s90
      %s112 = sphi 0, %s114
      %s115 = sphi 0, %s112
      %s116 = sphi 0, %s115
      %s132 = sphi 0, %s116
      %s140 = sphi 0, %s142
      %s143 = sphi 0, %s140
      %s144 = sphi 0, %s143
      %s160 = sphi 0, %s144
    $region4: #{tpu_custom_call.1} parent=1 // loop_header_branch
      %20 = sbr.rel (%p18) target = $region8
    $region5: #{tpu_custom_call.1} parent=1 // loop_body
      %s22 = ssub.s32 %s17, 1
      %s23 = ssub.s32 %s17, 2
      %s30 = sadd.s32 1, %s25
      %p31 = scmp.ge.s32.totalorder %s30, 2
      %s32 = scalar_select %p31, 0, %s30
      %s33 = sadd.s32 1, %s24
      %s34 = scalar_select %p31, %s33, %s24
      %p35 = scmp.ge.s32.totalorder %s34, 2
      %s36 = scalar_select %p35, 0, %s34
      %s37 = ssub.s32 %s24, %s36
      %p38 = scmp.eq.s32.totalorder %s37, 0
      %s40 = sadd.s32 %s39, 1
      %s41 = scalar_select %p38, %s39, %s40
      %p44 = pneg %p38
      %p45 = scmp.eq.s32.totalorder %s17, 3
      %p46 = por %p44, %p45
      %p47 = scmp.ne.s32.totalorder %s39, %s42
      %p48 = scmp.eq.s32.totalorder %s17, 0
      %p49 = por %p47, %p48
      %p50 = scmp.ne.s32.totalorder %s39, %s42
      %p51 = scmp.eq.s32.totalorder %s22, 3
      %p52 = por %p50, %p51
      %p53 = scmp.ne.s32.totalorder %s42, %s43
      %p54 = scmp.eq.s32.totalorder %s22, 0
      %p55 = por %p53, %p54
      %p56 = scmp.ne.s32.totalorder %s42, %s43
      %p57 = scmp.eq.s32.totalorder %s23, 3
      %p58 = por %p56, %p57
      %p60 = scmp.ne.s32.totalorder %s43, %s59
      %p61 = scmp.eq.s32.totalorder %s23, 0
      %p62 = por %p60, %p61
      %s64 = sadd.s32 %s63, 1
      %p67 = scmp.eq.s32.totalorder %s17, 3
      %p68 = scmp.ne.s32.totalorder %s63, %s65
      %p69 = scmp.eq.s32.totalorder %s17, 0
      %p70 = por %p68, %p69
      %p71 = scmp.ne.s32.totalorder %s63, %s65
      %p72 = scmp.eq.s32.totalorder %s22, 3
      %p73 = por %p71, %p72
      %p74 = scmp.ne.s32.totalorder %s65, %s66
      %p75 = scmp.eq.s32.totalorder %s22, 0
      %p76 = por %p74, %p75
      %p77 = scmp.ne.s32.totalorder %s65, %s66
      %p78 = scmp.eq.s32.totalorder %s23, 3
      %p79 = por %p77, %p78
      %p81 = scmp.ne.s32.totalorder %s66, %s80
      %p82 = scmp.eq.s32.totalorder %s23, 0
      %p83 = por %p81, %p82
      %s84 = ssub.s32 %s25, %s32
      %p85 = scmp.eq.s32.totalorder %s84, 0
      %s87 = sadd.s32 %s86, 1
      %s88 = scalar_select %p85, %s86, %s87
      %p91 = pneg %p85
      %p92 = scmp.eq.s32.totalorder %s17, 3
      %p93 = por %p91, %p92
      %p94 = scmp.ne.s32.totalorder %s86, %s89
      %p95 = scmp.eq.s32.totalorder %s17, 0
      %p96 = por %p94, %p95
      %p97 = scmp.ne.s32.totalorder %s86, %s89
      %p98 = scmp.eq.s32.totalorder %s22, 3
      %p99 = por %p97, %p98
      %p100 = scmp.ne.s32.totalorder %s89, %s90
      %p101 = scmp.eq.s32.totalorder %s22, 0
      %p102 = por %p100, %p101
      %p103 = scmp.ne.s32.totalorder %s89, %s90
      %p104 = scmp.eq.s32.totalorder %s23, 3
      %p105 = por %p103, %p104
      %p107 = scmp.ne.s32.totalorder %s90, %s106
      %p108 = scmp.eq.s32.totalorder %s23, 0
      %p109 = por %p107, %p108
      %s110 = ssub.s32 %s24, %s36
      %p111 = scmp.eq.s32.totalorder %s110, 0
      %s113 = sadd.s32 %s112, 1
      %s114 = scalar_select %p111, %s112, %s113
      %p117 = pneg %p111
      %p118 = scmp.eq.s32.totalorder %s17, 3
      %p119 = por %p117, %p118
      %p120 = scmp.ne.s32.totalorder %s112, %s115
      %p121 = scmp.eq.s32.totalorder %s17, 0
      %p122 = por %p120, %p121
      %p123 = scmp.ne.s32.totalorder %s112, %s115
      %p124 = scmp.eq.s32.totalorder %s22, 3
      %p125 = por %p123, %p124
      %p126 = scmp.ne.s32.totalorder %s115, %s116
      %p127 = scmp.eq.s32.totalorder %s22, 0
      %p128 = por %p126, %p127
      %p129 = scmp.ne.s32.totalorder %s115, %s116
      %p130 = scmp.eq.s32.totalorder %s23, 3
      %p131 = por %p129, %p130
      %p133 = scmp.ne.s32.totalorder %s116, %s132
      %p134 = scmp.eq.s32.totalorder %s23, 0
      %p135 = por %p133, %p134
      %s136 = ssub.s32 %s24, %s36
      %s137 = ssub.s32 %s25, %s32
      %s138 = sor.u32 %s136, %s137
      %p139 = scmp.eq.s32.totalorder %s138, 0
      %s141 = sadd.s32 %s140, 1
      %s142 = scalar_select %p139, %s140, %s141
      %p145 = pneg %p139
      %p146 = scmp.eq.s32.totalorder %s17, 3
      %p147 = por %p145, %p146
      %p148 = scmp.ne.s32.totalorder %s140, %s143
      %p149 = scmp.eq.s32.totalorder %s17, 0
      %p150 = por %p148, %p149
      %p151 = scmp.ne.s32.totalorder %s140, %s143
      %p152 = scmp.eq.s32.totalorder %s22, 3
      %p153 = por %p151, %p152
      %p154 = scmp.ne.s32.totalorder %s143, %s144
      %p155 = scmp.eq.s32.totalorder %s22, 0
      %p156 = por %p154, %p155
      %p157 = scmp.ne.s32.totalorder %s143, %s144
      %p158 = scmp.eq.s32.totalorder %s23, 3
      %p159 = por %p157, %p158
      %p161 = scmp.ne.s32.totalorder %s144, %s160
      %p162 = scmp.eq.s32.totalorder %s23, 0
      %p163 = por %p161, %p162
      %p164 = scmp.le.s32.totalorder 1, %s17
      %p165 = scmp.lt.s32.totalorder %s17, 5
      %p166 = pnand %p164, %p165
      %p167 = pneg %p166
      // Predicated region
      $region9: #{tpu_custom_call.1} parent=5 // pred_check
        _
      $region10: #{tpu_custom_call.1} parent=5 // pred_check_branch
        %169 = sbr.rel (%p166) target = $region12
      $region11: #{tpu_custom_call.1} parent=5 // pred_region
        %s170 = ssub.s32 %s17, 1
        // Predicated region
        $region13: #{tpu_custom_call.1} parent=11 // pred_check
          %p171 = pneg %p55
        $region14: #{tpu_custom_call.1} parent=11 // pred_check_branch
          %173 = sbr.rel (%p171) target = $region16
        $region15: #{tpu_custom_call.1} parent=11 // pred_region
          %p174 = scmp.lt.s32.totalorder %s26, 1
          %s175 = scalar_select %p174, %s26, 1
          %s176 = smul.addr %s175, 8
          %s177 = scalar_lea.vmem %s0, %s176
        $region16: #{tpu_custom_call.1} parent=11 // pred_fallthru
          _
        // Predicated region
        $region17: #{tpu_custom_call.1} parent=11 // pred_check
          %p178 = pneg %p76
        $region18: #{tpu_custom_call.1} parent=11 // pred_check_branch
          %180 = sbr.rel (%p178) target = $region20
        $region19: #{tpu_custom_call.1} parent=11 // pred_region
          %s182 = ssub.s32 512, 512
          %183 = vsyncadd [#allocation4], %s182
          %s184 = sshll.u32 [#allocation3], 4
          %s185 = int_to_ptr.vmem [resolvable:$true] %s184
          %190 = dma.hbm_to_vmem [thread:$0]  %s1, 512, %s185, [#allocation4], 128, 128, 8
        $region20: #{tpu_custom_call.1} parent=11 // pred_fallthru
          _
      $region12: #{tpu_custom_call.1} parent=5 // pred_fallthru
        _
      %p191 = scmp.lt.s32.totalorder %s17, 4
      // Predicated region
      $region21: #{tpu_custom_call.1} parent=5 // pred_check
        %p192 = pneg %p191
      $region22: #{tpu_custom_call.1} parent=5 // pred_check_branch
        %194 = sbr.rel (%p192) target = $region24
      $region23: #{tpu_custom_call.1} parent=5 // pred_region
        // Predicated region
        $region25: #{tpu_custom_call.1} parent=23 // pred_check
          %p195 = pneg %p96
        $region26: #{tpu_custom_call.1} parent=23 // pred_check_branch
          %197 = sbr.rel (%p195) target = $region28
        $region27: #{tpu_custom_call.1} parent=23 // pred_region
          %s198 = sand.u32 %s86, 1
          %s199 = scalar_lea.sflag [#allocation7], %s198
          %s200 = sand.u32 %s86, 1
          %s201 = smul.addr %s200, 64
          %s202 = scalar_lea.vmem [#allocation6], %s201
          %s204 = ssub.s32 1024, 1024
          %205 = vsyncadd %s199, %s204
          %s206 = smul.addr %s25, 64
          %s207 = scalar_lea.hbm %s2, %s206
          %s208 = sshll.u32 %s202, 4
          %s209 = int_to_ptr.vmem [resolvable:$true] %s208
          %214 = dma.hbm_to_vmem [thread:$0]  %s207, 1024, %s209, %s199, 128, 64, 4
        $region28: #{tpu_custom_call.1} parent=23 // pred_fallthru
          _
        // Predicated region
        $region29: #{tpu_custom_call.1} parent=23 // pred_check
          %p215 = pneg %p122
        $region30: #{tpu_custom_call.1} parent=23 // pred_check_branch
          %217 = sbr.rel (%p215) target = $region32
        $region31: #{tpu_custom_call.1} parent=23 // pred_region
          %p218 = scmp.lt.s32.totalorder %s24, 1
          %s219 = scalar_select %p218, %s24, 1
          %s220 = smul.addr %s219, 8
          %s221 = scalar_lea.vmem %s3, %s220
        $region32: #{tpu_custom_call.1} parent=23 // pred_fallthru
          _
      $region24: #{tpu_custom_call.1} parent=5 // pred_fallthru
        _
      %p222 = scmp.le.s32.totalorder 1, %s17
      %p223 = scmp.lt.s32.totalorder %s17, 5
      %p224 = pnand %p222, %p223
      %p225 = pneg %p224
      // Predicated region
      $region33: #{tpu_custom_call.1} parent=5 // pred_check
        _
      $region34: #{tpu_custom_call.1} parent=5 // pred_check_branch
        %227 = sbr.rel (%p224) target = $region36
      $region35: #{tpu_custom_call.1} parent=5 // pred_region
        %s228 = ssub.s32 %s17, 1
        // Predicated region
        $region37: #{tpu_custom_call.1} parent=35 // pred_check
          %p229 = pneg %p76
        $region38: #{tpu_custom_call.1} parent=35 // pred_check_branch
          %231 = sbr.rel (%p229) target = $region40
        $region39: #{tpu_custom_call.1} parent=35 // pred_region
          %232 = dma.done [#allocation4], 512
        $region40: #{tpu_custom_call.1} parent=35 // pred_fallthru
          _
        %s233 = sand.u32 %s89, 1
        %s234 = scalar_lea.sflag [#allocation7], %s233
        %s235 = sand.u32 %s89, 1
        %s236 = smul.addr %s235, 64
        %s237 = scalar_lea.vmem [#allocation6], %s236
        // Predicated region
        $region41: #{tpu_custom_call.1} parent=35 // pred_check
          %p238 = pneg %p102
        $region42: #{tpu_custom_call.1} parent=35 // pred_check_branch
          %240 = sbr.rel (%p238) target = $region44
        $region43: #{tpu_custom_call.1} parent=35 // pred_region
          %241 = dma.done %s234, 1024
        $region44: #{tpu_custom_call.1} parent=35 // pred_fallthru
          _
        %p242 = scmp.lt.s32.totalorder %s26, 1
        %s243 = scalar_select %p242, %s26, 1
        %s244 = smul.addr %s243, 8
        %s245 = scalar_lea.vmem %s0, %s244
        %p246 = pneg %p55
        %p247 = pneg %p52
        %p248 = pneg %p76
        %p249 = pneg %p73
        %s250 = sand.u32 %s89, 1
        %s251 = scalar_lea.sflag [#allocation7], %s250
        %s252 = sand.u32 %s89, 1
        %s253 = smul.addr %s252, 64
        %s254 = scalar_lea.vmem [#allocation6], %s253
        %p255 = pneg %p102
        %p256 = pneg %p99
        %p257 = scmp.lt.s32.totalorder %s26, 1
        %s258 = scalar_select %p257, %s26, 1
        %s259 = smul.addr %s258, 8
        %s260 = scalar_lea.vmem %s3, %s259
        %p261 = pneg %p128
        %p262 = pneg %p125
        %p263 = pneg %p156
        %p264 = pneg %p153
        %s265 = sand.u32 %s143, 1
        %s266 = scalar_lea.sflag [#allocation5], %s265
        %s267 = sand.u32 %s143, 1
        %s268 = smul.addr %s267, 8
        %s269 = scalar_lea.vmem [#allocation8], %s268
        %p270 = scmp.lt.s32.totalorder %s26, 1
        %s271 = scalar_select %p270, %s26, 1
        %s272 = smul.addr %s271, 8
        %s273 = scalar_lea.vmem %s0, %s272
        %p274 = scmp.lt.s32.totalorder %s26, 1
        %s275 = scalar_select %p274, %s26, 1
        %s276 = smul.addr %s275, 8
        %s277 = scalar_lea.vmem %s3, %s276
        %p279 = scmp.eq.s32.totalorder %s27, 0
        // Predicated region
        $region45: #{tpu_custom_call.1} parent=35 // pred_check
          %p280 = pneg %p279
        $region46: #{tpu_custom_call.1} parent=35 // pred_check_branch
          %282 = sbr.rel (%p280) target = $region48
        $region47: #{tpu_custom_call.1} parent=35 // pred_region
          %v283 = vld [vmem:[%s273] sm:$0xff]
          %v284 = vld [vmem:[#allocation3] sm:$0xff]
          %v285 = vld [vmem:[#allocation3 + $0x8] sm:$0xff]
          %v286 = vld [vmem:[#allocation3 + $0x10] sm:$0xff]
          %v287 = vld [vmem:[#allocation3 + $0x18] sm:$0xff]
          %vm288 = vcmask 261120
          %v290 = vsel %vm288, %v283, 0
          %292 = vmatprep.subr.mxu0 0.0
          %293 = vmatpush1.msra.mxu0 0.0
          %294 = vmatprep.subr.mxu0 0.0
          %295 = vmatpush1.msra.mxu0 0.0
          %296 = vmatprep.subr.mxu0 0.0
          %297 = vmatpush1.msra.mxu0 0.0
          %298 = vmatprep.subr.mxu0 0.0
          %299 = vmatpush1.msra.mxu0 0.0
          %300 = vmatprep.subr.mxu0 0.0
          %301 = vmatpush1.msra.mxu0 0.0
          %302 = vmatprep.subr.mxu0 0.0
          %303 = vmatpush1.msra.mxu0 0.0
          %304 = vmatprep.subr.mxu0 0.0
          %305 = vmatpush1.msra.mxu0 0.0
          %306 = vmatprep.subr.mxu0 0.0
          %307 = vmatpush1.msra.mxu0 0.0
          %308 = vmatprep.subr.mxu0 0.0
          %309 = vmatpush1.msra.mxu0 0.0
          %310 = vmatprep.subr.mxu0 0.0
          %311 = vmatpush1.msra.mxu0 0.0
          %312 = vmatprep.subr.mxu0 0.0
          %313 = vmatpush1.msra.mxu0 0.0
          %314 = vmatprep.subr.mxu0 0.0
          %315 = vmatpush1.msra.mxu0 0.0
          %316 = vmatprep.subr.mxu0 0.0
          %317 = vmatpush1.msra.mxu0 %v287
          %318 = vmatprep.subr.mxu0 0.0
          %319 = vmatpush1.msra.mxu0 %v286
          %320 = vmatprep.subr.mxu0 0.0
          %321 = vmatpush1.msra.mxu0 %v285
          %322 = vmatprep.subr.mxu0 0.0
          %323 = vmatpush1.msra.mxu0 %v284
          %324 = vmatprep.subr.mxu0 0.0
          %325 = vmatpush2.msra.mxu0 0.0
          %326 = vmatprep.subr.mxu0 0.0
          %327 = vmatpush2.msra.mxu0 0.0
          %328 = vmatprep.subr.mxu0 0.0
          %329 = vmatpush2.msra.mxu0 0.0
          %330 = vmatprep.subr.mxu0 0.0
          %331 = vmatpush2.msra.mxu0 0.0
          %332 = vmatprep.subr.mxu0 0.0
          %333 = vmatpush2.msra.mxu0 0.0
          %334 = vmatprep.subr.mxu0 0.0
          %335 = vmatpush2.msra.mxu0 0.0
          %336 = vmatprep.subr.mxu0 0.0
          %337 = vmatpush2.msra.mxu0 0.0
          %338 = vmatprep.subr.mxu0 0.0
          %339 = vmatpush2.msra.mxu0 0.0
          %340 = vmatprep.subr.mxu0 0.0
          %341 = vmatpush2.msra.mxu0 0.0
          %342 = vmatprep.subr.mxu0 0.0
          %343 = vmatpush2.msra.mxu0 0.0
          %344 = vmatprep.subr.mxu0 0.0
          %345 = vmatpush2.msra.mxu0 0.0
          %346 = vmatprep.subr.mxu0 0.0
          %347 = vmatpush2.msra.mxu0 0.0
          %348 = vmatprep.subr.mxu0 0.0
          %349 = vmatpush2.msra.mxu0 0.0
          %350 = vmatprep.subr.mxu0 0.0
          %351 = vmatpush2.msra.mxu0 0.0
          %352 = vmatprep.subr.mxu0 0.0
          %353 = vmatpush2.msra.mxu0 0.0
          %354 = vmatprep.subr.mxu0 0.0
          %355 = vmatpush2.msra.mxu0 0.0
          %356 = vmatprep.mubr.f32.mxu0 0.0
          %357 = vmatmul.mubr.f32.gmra.mxu0 %v290
          %v358 = vpop.f32.mrf.mxu0
          %v359 = vadd.f32 0.0, %v358
          %v360 = vpop.f32.mrf.mxu0
          %361 = vdwg.mxu0
          %v362 = vmul.f32 %v359, %v359
          %363 = vadd.xlane.f32.xlu0 %v362
          %v364 = vpop.xlane.xlu0 %363
          %v365 = vmax.f32 %v364, 1e-24
          %v366 = vrsqrt.pop %v365
          %v367 = vmul.f32 %v359, %v366
          %v368 = vpack.c.bf16 %v367, %v367
          %369 = vst [vmem:[#allocation2] sm:$0xf] %v368
        $region48: #{tpu_custom_call.1} parent=35 // pred_fallthru
          _
        %v370 = vld [vmem:[#allocation2] sm:$0xf]
        %v371 = vld [vmem:[%s237] sm:$0xf]
        %v372 = vld [vmem:[%s237 + $0x4] sm:$0xf]
        %v373 = vld [vmem:[%s237 + $0x8] sm:$0xf]
        %v374 = vld [vmem:[%s237 + $0xc] sm:$0xf]
        %v375 = vld [vmem:[%s237 + $0x10] sm:$0xf]
        %v376 = vld [vmem:[%s237 + $0x14] sm:$0xf]
        %v377 = vld [vmem:[%s237 + $0x18] sm:$0xf]
        %v378 = vld [vmem:[%s237 + $0x1c] sm:$0xf]
        %v379 = vld [vmem:[%s237 + $0x20] sm:$0xf]
        %v380 = vld [vmem:[%s237 + $0x24] sm:$0xf]
        %v381 = vld [vmem:[%s237 + $0x28] sm:$0xf]
        %v382 = vld [vmem:[%s237 + $0x2c] sm:$0xf]
        %v383 = vld [vmem:[%s237 + $0x30] sm:$0xf]
        %v384 = vld [vmem:[%s237 + $0x34] sm:$0xf]
        %v385 = vld [vmem:[%s237 + $0x38] sm:$0xf]
        %v386 = vld [vmem:[%s237 + $0x3c] sm:$0xf]
        %v403 = vunpack.c.l.b16 %v371
        %v404 = vunpack.c.l.b16 %v372
        %v405 = vunpack.c.l.b16 %v373
        %v406 = vunpack.c.l.b16 %v374
        %v407 = vunpack.c.l.b16 %v375
        %v408 = vunpack.c.l.b16 %v376
        %v409 = vunpack.c.l.b16 %v377
        %v410 = vunpack.c.l.b16 %v378
        %v411 = vunpack.c.l.b16 %v379
        %v412 = vunpack.c.l.b16 %v380
        %v413 = vunpack.c.l.b16 %v381
        %v414 = vunpack.c.l.b16 %v382
        %v415 = vunpack.c.l.b16 %v383
        %v416 = vunpack.c.l.b16 %v384
        %v417 = vunpack.c.l.b16 %v385
        %v418 = vunpack.c.l.b16 %v386
        %v419 = vpack.c.b16 %v404, %v403
        %v420 = vpack.c.b16 %v406, %v405
        %v421 = vpack.c.b16 %v408, %v407
        %v422 = vpack.c.b16 %v410, %v409
        %v423 = vpack.c.b16 %v412, %v411
        %v424 = vpack.c.b16 %v414, %v413
        %v425 = vpack.c.b16 %v416, %v415
        %v426 = vpack.c.b16 %v418, %v417
        %435 = vmatprep.subr.bf16.mxu0 0
        %436 = vmatpush1.bf16.msra.mxu0 %v426
        %437 = vmatprep.subr.bf16.mxu0 0
        %438 = vmatpush1.bf16.msra.mxu0 %v425
        %439 = vmatprep.subr.bf16.mxu0 0
        %440 = vmatpush1.bf16.msra.mxu0 %v424
        %441 = vmatprep.subr.bf16.mxu0 0
        %442 = vmatpush1.bf16.msra.mxu0 %v423
        %443 = vmatprep.subr.bf16.mxu0 0
        %444 = vmatpush1.bf16.msra.mxu0 %v422
        %445 = vmatprep.subr.bf16.mxu0 0
        %446 = vmatpush1.bf16.msra.mxu0 %v421
        %447 = vmatprep.subr.bf16.mxu0 0
        %448 = vmatpush1.bf16.msra.mxu0 %v420
        %449 = vmatprep.subr.bf16.mxu0 0
        %450 = vmatpush1.bf16.msra.mxu0 %v419
        %451 = vmatprep.subr.bf16.mxu0 0
        %452 = vmatpush2.bf16.msra.mxu0 0
        %453 = vmatprep.subr.bf16.mxu0 0
        %454 = vmatpush2.bf16.msra.mxu0 0
        %455 = vmatprep.subr.bf16.mxu0 0
        %456 = vmatpush2.bf16.msra.mxu0 0
        %457 = vmatprep.subr.bf16.mxu0 0
        %458 = vmatpush2.bf16.msra.mxu0 0
        %459 = vmatprep.subr.bf16.mxu0 0
        %460 = vmatpush2.bf16.msra.mxu0 0
        %461 = vmatprep.subr.bf16.mxu0 0
        %462 = vmatpush2.bf16.msra.mxu0 0
        %463 = vmatprep.subr.bf16.mxu0 0
        %464 = vmatpush2.bf16.msra.mxu0 0
        %465 = vmatprep.subr.bf16.mxu0 0
        %466 = vmatpush2.bf16.msra.mxu0 0
        %467 = vmatprep.mubr.bf16.mxu0 0
        %468 = vmatmul.mubr.bf16.gmra.mxu0 %v370
        %v469 = vpop.f32.mrf.mxu0
        %v470 = vadd.f32 0.0, %v469
        %v471 = vpop.f32.mrf.mxu0
        %v472 = vpop.f32.mrf.mxu0
        %v473 = vpop.f32.mrf.mxu0
        %474 = vdwg.mxu0
        %v475 = vlaneseq
        %v476 = vand.u32 %v475, 127
        %v477 = vld [vmem:[%s277] sm:$0xff]
        %s478 = smul.u32 %s27, 128
        %v479 = vstv %s478
        %v480 = vsub.s32 %v477, %v479
        %481 = vset.pattern.permute.xlu0 0
        %482 = vperm.xlu0 %481, %v480
        %v483 = vpop.permute.xlu0 %482
        %vm484 = vcmp.eq.s32.totalorder %v476, %v483
        %v485 = vmul.f32 %v470, 30.0
        %v486 = vsub.f32 %v485, 12.0
        %v487 = vsel %vm484, %v486, %v485
        %488 = vst [vmem:[%s269] sm:$0xff] %v487
        %s489 = sand.u32 %s143, 1
        %s490 = scalar_lea.sflag [#allocation5], %s489
        %s491 = sand.u32 %s143, 1
        %s492 = smul.addr %s491, 8
        %s493 = scalar_lea.vmem [#allocation8], %s492
        // Predicated region
        $region49: #{tpu_custom_call.1} parent=35 // pred_check
          %p494 = pneg %p153
        $region50: #{tpu_custom_call.1} parent=35 // pred_check_branch
          %496 = sbr.rel (%p494) target = $region52
        $region51: #{tpu_custom_call.1} parent=35 // pred_region
          %s498 = ssub.s32 128, 128
          %499 = vsyncadd %s490, %s498
          %s500 = smul.addr %s26, 2
          %s501 = sadd.s32 %s27, %s500
          %s502 = smul.addr %s501, 128
          %s503 = scalar_lea.hbm %s4, %s502
          %s505 = sshll.u32 %s493, 4
          %s506 = int_to_ptr.vmem [resolvable:$true] %s505
          %508 = dma.vmem_to_hbm [thread:$0]  %s506, 128, %s503, %s490
        $region52: #{tpu_custom_call.1} parent=35 // pred_fallthru
          _
      $region36: #{tpu_custom_call.1} parent=5 // pred_fallthru
        _
      %p509 = scmp.le.s32.totalorder 2, %s17
      // Predicated region
      $region53: #{tpu_custom_call.1} parent=5 // pred_check
        %p510 = pneg %p509
      $region54: #{tpu_custom_call.1} parent=5 // pred_check_branch
        %512 = sbr.rel (%p510) target = $region56
      $region55: #{tpu_custom_call.1} parent=5 // pred_region
        %s513 = ssub.s32 %s17, 2
        // Predicated region
        $region57: #{tpu_custom_call.1} parent=55 // pred_check
          %p514 = pneg %p159
        $region58: #{tpu_custom_call.1} parent=55 // pred_check_branch
          %516 = sbr.rel (%p514) target = $region60
        $region59: #{tpu_custom_call.1} parent=55 // pred_region
          %s517 = sand.u32 %s144, 1
          %s518 = scalar_lea.sflag [#allocation5], %s517
          %s519 = sand.u32 %s144, 1
          %s520 = smul.addr %s519, 8
          %s521 = scalar_lea.vmem [#allocation8], %s520
          %522 = dma.done %s518, 128
        $region60: #{tpu_custom_call.1} parent=55 // pred_fallthru
          _
      $region56: #{tpu_custom_call.1} parent=5 // pred_fallthru
        _
    $region6: #{tpu_custom_call.1} parent=1 // loop_footer
      %s21 = sadd.s32 1, %s17
    $region7: #{tpu_custom_call.1} parent=1 // loop_footer_branch
      %16 = sbr.rel target = $region3
    $region8: #{tpu_custom_call.1} parent=1 // loop_exit
      _
    %523 = vsyncpa [#allocation4], 1
    %s524 = scalar_lea.sflag [#allocation4], 1
    %525 = vsyncpa %s524, 1
    %526 = vsyncpa [#allocation7], 1
    %s527 = scalar_lea.sflag [#allocation7], 1
    %528 = vsyncpa %s527, 1
    %529 = vsyncpa [#allocation5], 1
    %s530 = scalar_lea.sflag [#allocation5], 1
    %531 = vsyncpa %s530, 1

// kernel: tpu_custom_call.1
$region0: #{tpu_custom_call.1}
  #allocation0 [shape = 'u32[]', space=smem, size = 0x4, offset = 0x4, fixed_abs, tag = 'smem constant byte address 0x4 - core index']
  #allocation1 [shape = 'u32[144,128]{1,0:T(1,128)}', space=vmem, size = 0x12000, scoped, tag = 'internal scratch']
  #allocation2 [shape = 'bf16[8,128]{1,0:T(8,128)(2,1)}', space=vmem, size = 0x800, scoped, tag = 'scratch operand']
  %s0 = inlined_call_operand.vmem [shape: f32[16,32], index: 0, kind: input, shape index: {}]
  %s1 = inlined_call_operand.hbm [shape: f32[32,128], index: 1, kind: input, shape index: {}]
  %s2 = inlined_call_operand.hbm [shape: bf16[128,256], index: 2, kind: input, shape index: {}]
  %s3 = inlined_call_operand.vmem [shape: s32[16,1], index: 3, kind: input, shape index: {}]
  %s4 = inlined_call_operand.hbm [shape: f32[16,256], index: 4, kind: output, shape index: {}]
  %s5 = sld [smem:[#allocation0]]
  $region61: #{tpu_custom_call.1} parent=0
    _
  %s7 = ssub.s32 1, %s5
  %s8 = scalar_select 0, %s7, %s5
  $region1: #{tpu_custom_call.1} parent=0
    #allocation3 [shape = 'u8[16384]{0}', space=vmem, size = 0x4000, scoped, tag = 'input window, operand 1, single buffered']
    #allocation4 [shape = 's32[2]{0}', space=sflag, size = 0x8, scoped, tag = 'scoped memory for tpu_custom_call.1']
    #allocation5 [shape = 's32[2]{0}', space=sflag, size = 0x8, scoped, tag = 'scoped memory for tpu_custom_call.1']
    #allocation6 [shape = 'u8[65536]{0}', space=vmem, size = 0x10000, scoped, tag = 'input window, operand 2']
    #allocation7 [shape = 's32[2]{0}', space=sflag, size = 0x8, scoped, tag = 'scoped memory for tpu_custom_call.1']
    #allocation8 [shape = 'u8[8192]{0}', space=vmem, size = 0x2000, scoped, tag = 'output window, operand 0']
    %9 = vsyncpa [#allocation4], 0
    %10 = vsyncpa [#allocation7], 0
    %s11 = scalar_lea.sflag [#allocation7], 1
    %12 = vsyncpa %s11, 0
    %13 = vsyncpa [#allocation5], 0
    %s14 = scalar_lea.sflag [#allocation5], 1
    %15 = vsyncpa %s14, 0
    loop: start=0, step=1, limit=6
    $region2: #{tpu_custom_call.1} parent=1 // loop_pre_header
      _
    $region3: #{tpu_custom_call.1} parent=1 // loop_header
      %s17 = sphi 0, %s21
      %p18 = scmp.ge.s32.totalorder %s17, 6
      %s24 = sphi 0, %s36
      %s25 = sphi 0, %s32
      %s26 = sphi 0, %s24
      %s27 = sphi 0, %s25
      %s28 = sphi 0, %s26
      %s29 = sphi 0, %s27
      %s39 = sphi 0, %s41
      %s42 = sphi 0, %s39
      %s43 = sphi 0, %s42
      %s59 = sphi 0, %s43
      %s63 = sphi 0, %s63
      %s65 = sphi 0, %s63
      %s66 = sphi 0, %s65
      %s80 = sphi 0, %s66
      %s86 = sphi 0, %s88
      %s89 = sphi 0, %s86
      %s90 = sphi 0, %s89
      %s106 = sphi 0, %s90
      %s112 = sphi 0, %s114
      %s115 = sphi 0, %s112
      %s116 = sphi 0, %s115
      %s132 = sphi 0, %s116
      %s140 = sphi 0, %s142
      %s143 = sphi 0, %s140
      %s144 = sphi 0, %s143
      %s160 = sphi 0, %s144
    $region4: #{tpu_custom_call.1} parent=1 // loop_header_branch
      %20 = sbr.rel (%p18) target = $region8
    $region5: #{tpu_custom_call.1} parent=1 // loop_body
      %s22 = ssub.s32 %s17, 1
      %s23 = ssub.s32 %s17, 2
      %s30 = sadd.s32 1, %s25
      %p31 = scmp.ge.s32.totalorder %s30, 2
      %s32 = scalar_select %p31, 0, %s30
      %s33 = sadd.s32 1, %s24
      %s34 = scalar_select %p31, %s33, %s24
      %p35 = scmp.ge.s32.totalorder %s34, 2
      %s36 = scalar_select %p35, 0, %s34
      %s37 = ssub.s32 %s24, %s36
      %p38 = scmp.eq.s32.totalorder %s37, 0
      %s40 = sadd.s32 %s39, 1
      %s41 = scalar_select %p38, %s39, %s40
      %p44 = pneg %p38
      %p45 = scmp.eq.s32.totalorder %s17, 3
      %p46 = por %p44, %p45
      %p47 = scmp.ne.s32.totalorder %s39, %s42
      %p48 = scmp.eq.s32.totalorder %s17, 0
      %p49 = por %p47, %p48
      %p50 = scmp.ne.s32.totalorder %s39, %s42
      %p51 = scmp.eq.s32.totalorder %s22, 3
      %p52 = por %p50, %p51
      %p53 = scmp.ne.s32.totalorder %s42, %s43
      %p54 = scmp.eq.s32.totalorder %s22, 0
      %p55 = por %p53, %p54
      %p56 = scmp.ne.s32.totalorder %s42, %s43
      %p57 = scmp.eq.s32.totalorder %s23, 3
      %p58 = por %p56, %p57
      %p60 = scmp.ne.s32.totalorder %s43, %s59
      %p61 = scmp.eq.s32.totalorder %s23, 0
      %p62 = por %p60, %p61
      %s64 = sadd.s32 %s63, 1
      %p67 = scmp.eq.s32.totalorder %s17, 3
      %p68 = scmp.ne.s32.totalorder %s63, %s65
      %p69 = scmp.eq.s32.totalorder %s17, 0
      %p70 = por %p68, %p69
      %p71 = scmp.ne.s32.totalorder %s63, %s65
      %p72 = scmp.eq.s32.totalorder %s22, 3
      %p73 = por %p71, %p72
      %p74 = scmp.ne.s32.totalorder %s65, %s66
      %p75 = scmp.eq.s32.totalorder %s22, 0
      %p76 = por %p74, %p75
      %p77 = scmp.ne.s32.totalorder %s65, %s66
      %p78 = scmp.eq.s32.totalorder %s23, 3
      %p79 = por %p77, %p78
      %p81 = scmp.ne.s32.totalorder %s66, %s80
      %p82 = scmp.eq.s32.totalorder %s23, 0
      %p83 = por %p81, %p82
      %s84 = ssub.s32 %s25, %s32
      %p85 = scmp.eq.s32.totalorder %s84, 0
      %s87 = sadd.s32 %s86, 1
      %s88 = scalar_select %p85, %s86, %s87
      %p91 = pneg %p85
      %p92 = scmp.eq.s32.totalorder %s17, 3
      %p93 = por %p91, %p92
      %p94 = scmp.ne.s32.totalorder %s86, %s89
      %p95 = scmp.eq.s32.totalorder %s17, 0
      %p96 = por %p94, %p95
      %p97 = scmp.ne.s32.totalorder %s86, %s89
      %p98 = scmp.eq.s32.totalorder %s22, 3
      %p99 = por %p97, %p98
      %p100 = scmp.ne.s32.totalorder %s89, %s90
      %p101 = scmp.eq.s32.totalorder %s22, 0
      %p102 = por %p100, %p101
      %p103 = scmp.ne.s32.totalorder %s89, %s90
      %p104 = scmp.eq.s32.totalorder %s23, 3
      %p105 = por %p103, %p104
      %p107 = scmp.ne.s32.totalorder %s90, %s106
      %p108 = scmp.eq.s32.totalorder %s23, 0
      %p109 = por %p107, %p108
      %s110 = ssub.s32 %s24, %s36
      %p111 = scmp.eq.s32.totalorder %s110, 0
      %s113 = sadd.s32 %s112, 1
      %s114 = scalar_select %p111, %s112, %s113
      %p117 = pneg %p111
      %p118 = scmp.eq.s32.totalorder %s17, 3
      %p119 = por %p117, %p118
      %p120 = scmp.ne.s32.totalorder %s112, %s115
      %p121 = scmp.eq.s32.totalorder %s17, 0
      %p122 = por %p120, %p121
      %p123 = scmp.ne.s32.totalorder %s112, %s115
      %p124 = scmp.eq.s32.totalorder %s22, 3
      %p125 = por %p123, %p124
      %p126 = scmp.ne.s32.totalorder %s115, %s116
      %p127 = scmp.eq.s32.totalorder %s22, 0
      %p128 = por %p126, %p127
      %p129 = scmp.ne.s32.totalorder %s115, %s116
      %p130 = scmp.eq.s32.totalorder %s23, 3
      %p131 = por %p129, %p130
      %p133 = scmp.ne.s32.totalorder %s116, %s132
      %p134 = scmp.eq.s32.totalorder %s23, 0
      %p135 = por %p133, %p134
      %s136 = ssub.s32 %s24, %s36
      %s137 = ssub.s32 %s25, %s32
      %s138 = sor.u32 %s136, %s137
      %p139 = scmp.eq.s32.totalorder %s138, 0
      %s141 = sadd.s32 %s140, 1
      %s142 = scalar_select %p139, %s140, %s141
      %p145 = pneg %p139
      %p146 = scmp.eq.s32.totalorder %s17, 3
      %p147 = por %p145, %p146
      %p148 = scmp.ne.s32.totalorder %s140, %s143
      %p149 = scmp.eq.s32.totalorder %s17, 0
      %p150 = por %p148, %p149
      %p151 = scmp.ne.s32.totalorder %s140, %s143
      %p152 = scmp.eq.s32.totalorder %s22, 3
      %p153 = por %p151, %p152
      %p154 = scmp.ne.s32.totalorder %s143, %s144
      %p155 = scmp.eq.s32.totalorder %s22, 0
      %p156 = por %p154, %p155
      %p157 = scmp.ne.s32.totalorder %s143, %s144
      %p158 = scmp.eq.s32.totalorder %s23, 3
      %p159 = por %p157, %p158
      %p161 = scmp.ne.s32.totalorder %s144, %s160
      %p162 = scmp.eq.s32.totalorder %s23, 0
      %p163 = por %p161, %p162
      %p164 = scmp.le.s32.totalorder 1, %s17
      %p165 = scmp.lt.s32.totalorder %s17, 5
      %p166 = pnand %p164, %p165
      %p167 = pneg %p166
      // Predicated region
      $region9: #{tpu_custom_call.1} parent=5 // pred_check
        _
      $region10: #{tpu_custom_call.1} parent=5 // pred_check_branch
        %169 = sbr.rel (%p166) target = $region12
      $region11: #{tpu_custom_call.1} parent=5 // pred_region
        %s170 = ssub.s32 %s17, 1
        // Predicated region
        $region13: #{tpu_custom_call.1} parent=11 // pred_check
          %p171 = pneg %p76
        $region14: #{tpu_custom_call.1} parent=11 // pred_check_branch
          %173 = sbr.rel (%p171) target = $region16
        $region15: #{tpu_custom_call.1} parent=11 // pred_region
          %s175 = ssub.s32 512, 512
          %176 = vsyncadd [#allocation4], %s175
          %s177 = sshll.u32 [#allocation3], 4
          %s178 = int_to_ptr.vmem [resolvable:$true] %s177
          %183 = dma.hbm_to_vmem [thread:$0]  %s1, 512, %s178, [#allocation4], 128, 128, 8
        $region16: #{tpu_custom_call.1} parent=11 // pred_fallthru
          _
      $region12: #{tpu_custom_call.1} parent=5 // pred_fallthru
        _
      %p184 = scmp.lt.s32.totalorder %s17, 4
      // Predicated region
      $region17: #{tpu_custom_call.1} parent=5 // pred_check
        %p185 = pneg %p184
      $region18: #{tpu_custom_call.1} parent=5 // pred_check_branch
        %187 = sbr.rel (%p185) target = $region20
      $region19: #{tpu_custom_call.1} parent=5 // pred_region
        // Predicated region
        $region21: #{tpu_custom_call.1} parent=19 // pred_check
          %p188 = pneg %p49
        $region22: #{tpu_custom_call.1} parent=19 // pred_check_branch
          %190 = sbr.rel (%p188) target = $region24
        $region23: #{tpu_custom_call.1} parent=19 // pred_region
          %p191 = scmp.lt.s32.totalorder %s24, 1
          %s192 = scalar_select %p191, %s24, 1
          %s193 = smul.addr %s192, 8
          %s194 = scalar_lea.vmem %s0, %s193
        $region24: #{tpu_custom_call.1} parent=19 // pred_fallthru
          _
        // Predicated region
        $region25: #{tpu_custom_call.1} parent=19 // pred_check
          %p195 = pneg %p96
        $region26: #{tpu_custom_call.1} parent=19 // pred_check_branch
          %197 = sbr.rel (%p195) target = $region28
        $region27: #{tpu_custom_call.1} parent=19 // pred_region
          %s198 = sand.u32 %s86, 1
          %s199 = scalar_lea.sflag [#allocation7], %s198
          %s200 = sand.u32 %s86, 1
          %s201 = smul.addr %s200, 64
          %s202 = scalar_lea.vmem [#allocation6], %s201
          %s204 = ssub.s32 1024, 1024
          %205 = vsyncadd %s199, %s204
          %s206 = smul.addr %s25, 64
          %s207 = scalar_lea.hbm %s2, %s206
          %s208 = sshll.u32 %s202, 4
          %s209 = int_to_ptr.vmem [resolvable:$true] %s208
          %214 = dma.hbm_to_vmem [thread:$0]  %s207, 1024, %s209, %s199, 128, 64, 4
        $region28: #{tpu_custom_call.1} parent=19 // pred_fallthru
          _
        // Predicated region
        $region29: #{tpu_custom_call.1} parent=19 // pred_check
          %p215 = pneg %p122
        $region30: #{tpu_custom_call.1} parent=19 // pred_check_branch
          %217 = sbr.rel (%p215) target = $region32
        $region31: #{tpu_custom_call.1} parent=19 // pred_region
          %p218 = scmp.lt.s32.totalorder %s24, 1
          %s219 = scalar_select %p218, %s24, 1
          %s220 = smul.addr %s219, 8
          %s221 = scalar_lea.vmem %s3, %s220
        $region32: #{tpu_custom_call.1} parent=19 // pred_fallthru
          _
      $region20: #{tpu_custom_call.1} parent=5 // pred_fallthru
        _
      %p222 = scmp.le.s32.totalorder 1, %s17
      %p223 = scmp.lt.s32.totalorder %s17, 5
      %p224 = pnand %p222, %p223
      %p225 = pneg %p224
      // Predicated region
      $region33: #{tpu_custom_call.1} parent=5 // pred_check
        _
      $region34: #{tpu_custom_call.1} parent=5 // pred_check_branch
        %227 = sbr.rel (%p224) target = $region36
      $region35: #{tpu_custom_call.1} parent=5 // pred_region
        %s228 = ssub.s32 %s17, 1
        // Predicated region
        $region37: #{tpu_custom_call.1} parent=35 // pred_check
          %p229 = pneg %p76
        $region38: #{tpu_custom_call.1} parent=35 // pred_check_branch
          %231 = sbr.rel (%p229) target = $region40
        $region39: #{tpu_custom_call.1} parent=35 // pred_region
          %232 = dma.done [#allocation4], 512
        $region40: #{tpu_custom_call.1} parent=35 // pred_fallthru
          _
        %s233 = sand.u32 %s89, 1
        %s234 = scalar_lea.sflag [#allocation7], %s233
        %s235 = sand.u32 %s89, 1
        %s236 = smul.addr %s235, 64
        %s237 = scalar_lea.vmem [#allocation6], %s236
        // Predicated region
        $region41: #{tpu_custom_call.1} parent=35 // pred_check
          %p238 = pneg %p102
        $region42: #{tpu_custom_call.1} parent=35 // pred_check_branch
          %240 = sbr.rel (%p238) target = $region44
        $region43: #{tpu_custom_call.1} parent=35 // pred_region
          %241 = dma.done %s234, 1024
        $region44: #{tpu_custom_call.1} parent=35 // pred_fallthru
          _
        %p242 = scmp.lt.s32.totalorder %s26, 1
        %s243 = scalar_select %p242, %s26, 1
        %s244 = smul.addr %s243, 8
        %s245 = scalar_lea.vmem %s0, %s244
        %p246 = pneg %p55
        %p247 = pneg %p52
        %p248 = pneg %p76
        %p249 = pneg %p73
        %s250 = sand.u32 %s89, 1
        %s251 = scalar_lea.sflag [#allocation7], %s250
        %s252 = sand.u32 %s89, 1
        %s253 = smul.addr %s252, 64
        %s254 = scalar_lea.vmem [#allocation6], %s253
        %p255 = pneg %p102
        %p256 = pneg %p99
        %p257 = scmp.lt.s32.totalorder %s26, 1
        %s258 = scalar_select %p257, %s26, 1
        %s259 = smul.addr %s258, 8
        %s260 = scalar_lea.vmem %s3, %s259
        %p261 = pneg %p128
        %p262 = pneg %p125
        %p263 = pneg %p156
        %p264 = pneg %p153
        %s265 = sand.u32 %s143, 1
        %s266 = scalar_lea.sflag [#allocation5], %s265
        %s267 = sand.u32 %s143, 1
        %s268 = smul.addr %s267, 8
        %s269 = scalar_lea.vmem [#allocation8], %s268
        %p270 = scmp.lt.s32.totalorder %s26, 1
        %s271 = scalar_select %p270, %s26, 1
        %s272 = smul.addr %s271, 8
        %s273 = scalar_lea.vmem %s0, %s272
        %p274 = scmp.lt.s32.totalorder %s26, 1
        %s275 = scalar_select %p274, %s26, 1
        %s276 = smul.addr %s275, 8
        %s277 = scalar_lea.vmem %s3, %s276
        %p279 = scmp.eq.s32.totalorder %s27, 0
        // Predicated region
        $region45: #{tpu_custom_call.1} parent=35 // pred_check
          %p280 = pneg %p279
        $region46: #{tpu_custom_call.1} parent=35 // pred_check_branch
          %282 = sbr.rel (%p280) target = $region48
        $region47: #{tpu_custom_call.1} parent=35 // pred_region
          %v283 = vld [vmem:[%s273] sm:$0xff]
          %v284 = vld [vmem:[#allocation3] sm:$0xff]
          %v285 = vld [vmem:[#allocation3 + $0x8] sm:$0xff]
          %v286 = vld [vmem:[#allocation3 + $0x10] sm:$0xff]
          %v287 = vld [vmem:[#allocation3 + $0x18] sm:$0xff]
          %vm288 = vcmask 261120
          %v290 = vsel %vm288, %v283, 0
          %292 = vmatprep.subr.mxu0 0.0
          %293 = vmatpush1.msra.mxu0 0.0
          %294 = vmatprep.subr.mxu0 0.0
          %295 = vmatpush1.msra.mxu0 0.0
          %296 = vmatprep.subr.mxu0 0.0
          %297 = vmatpush1.msra.mxu0 0.0
          %298 = vmatprep.subr.mxu0 0.0
          %299 = vmatpush1.msra.mxu0 0.0
          %300 = vmatprep.subr.mxu0 0.0
          %301 = vmatpush1.msra.mxu0 0.0
          %302 = vmatprep.subr.mxu0 0.0
          %303 = vmatpush1.msra.mxu0 0.0
          %304 = vmatprep.subr.mxu0 0.0
          %305 = vmatpush1.msra.mxu0 0.0
          %306 = vmatprep.subr.mxu0 0.0
          %307 = vmatpush1.msra.mxu0 0.0
          %308 = vmatprep.subr.mxu0 0.0
          %309 = vmatpush1.msra.mxu0 0.0
          %310 = vmatprep.subr.mxu0 0.0
          %311 = vmatpush1.msra.mxu0 0.0
          %312 = vmatprep.subr.mxu0 0.0
          %313 = vmatpush1.msra.mxu0 0.0
          %314 = vmatprep.subr.mxu0 0.0
          %315 = vmatpush1.msra.mxu0 0.0
          %316 = vmatprep.subr.mxu0 0.0
          %317 = vmatpush1.msra.mxu0 %v287
          %318 = vmatprep.subr.mxu0 0.0
          %319 = vmatpush1.msra.mxu0 %v286
          %320 = vmatprep.subr.mxu0 0.0
          %321 = vmatpush1.msra.mxu0 %v285
          %322 = vmatprep.subr.mxu0 0.0
          %323 = vmatpush1.msra.mxu0 %v284
          %324 = vmatprep.subr.mxu0 0.0
          %325 = vmatpush2.msra.mxu0 0.0
          %326 = vmatprep.subr.mxu0 0.0
          %327 = vmatpush2.msra.mxu0 0.0
          %328 = vmatprep.subr.mxu0 0.0
          %329 = vmatpush2.msra.mxu0 0.0
          %330 = vmatprep.subr.mxu0 0.0
          %331 = vmatpush2.msra.mxu0 0.0
          %332 = vmatprep.subr.mxu0 0.0
          %333 = vmatpush2.msra.mxu0 0.0
          %334 = vmatprep.subr.mxu0 0.0
          %335 = vmatpush2.msra.mxu0 0.0
          %336 = vmatprep.subr.mxu0 0.0
          %337 = vmatpush2.msra.mxu0 0.0
          %338 = vmatprep.subr.mxu0 0.0
          %339 = vmatpush2.msra.mxu0 0.0
          %340 = vmatprep.subr.mxu0 0.0
          %341 = vmatpush2.msra.mxu0 0.0
          %342 = vmatprep.subr.mxu0 0.0
          %343 = vmatpush2.msra.mxu0 0.0
          %344 = vmatprep.subr.mxu0 0.0
          %345 = vmatpush2.msra.mxu0 0.0
          %346 = vmatprep.subr.mxu0 0.0
          %347 = vmatpush2.msra.mxu0 0.0
          %348 = vmatprep.subr.mxu0 0.0
          %349 = vmatpush2.msra.mxu0 0.0
          %350 = vmatprep.subr.mxu0 0.0
          %351 = vmatpush2.msra.mxu0 0.0
          %352 = vmatprep.subr.mxu0 0.0
          %353 = vmatpush2.msra.mxu0 0.0
          %354 = vmatprep.subr.mxu0 0.0
          %355 = vmatpush2.msra.mxu0 0.0
          %356 = vmatprep.mubr.f32.mxu0 0.0
          %357 = vmatmul.mubr.f32.gmra.mxu0 %v290
          %v358 = vpop.f32.mrf.mxu0
          %v359 = vadd.f32 0.0, %v358
          %v360 = vpop.f32.mrf.mxu0
          %361 = vdwg.mxu0
          %v362 = vmul.f32 %v359, %v359
          %363 = vadd.xlane.f32.xlu0 %v362
          %v364 = vpop.xlane.xlu0 %363
          %v365 = vmax.f32 %v364, 1e-24
          %v366 = vrsqrt.pop %v365
          %v367 = vmul.f32 %v359, %v366
          %v368 = vpack.c.bf16 %v367, %v367
          %369 = vst [vmem:[#allocation2] sm:$0xf] %v368
        $region48: #{tpu_custom_call.1} parent=35 // pred_fallthru
          _
        %v370 = vld [vmem:[#allocation2] sm:$0xf]
        %v371 = vld [vmem:[%s237] sm:$0xf]
        %v372 = vld [vmem:[%s237 + $0x4] sm:$0xf]
        %v373 = vld [vmem:[%s237 + $0x8] sm:$0xf]
        %v374 = vld [vmem:[%s237 + $0xc] sm:$0xf]
        %v375 = vld [vmem:[%s237 + $0x10] sm:$0xf]
        %v376 = vld [vmem:[%s237 + $0x14] sm:$0xf]
        %v377 = vld [vmem:[%s237 + $0x18] sm:$0xf]
        %v378 = vld [vmem:[%s237 + $0x1c] sm:$0xf]
        %v379 = vld [vmem:[%s237 + $0x20] sm:$0xf]
        %v380 = vld [vmem:[%s237 + $0x24] sm:$0xf]
        %v381 = vld [vmem:[%s237 + $0x28] sm:$0xf]
        %v382 = vld [vmem:[%s237 + $0x2c] sm:$0xf]
        %v383 = vld [vmem:[%s237 + $0x30] sm:$0xf]
        %v384 = vld [vmem:[%s237 + $0x34] sm:$0xf]
        %v385 = vld [vmem:[%s237 + $0x38] sm:$0xf]
        %v386 = vld [vmem:[%s237 + $0x3c] sm:$0xf]
        %v403 = vunpack.c.l.b16 %v371
        %v404 = vunpack.c.l.b16 %v372
        %v405 = vunpack.c.l.b16 %v373
        %v406 = vunpack.c.l.b16 %v374
        %v407 = vunpack.c.l.b16 %v375
        %v408 = vunpack.c.l.b16 %v376
        %v409 = vunpack.c.l.b16 %v377
        %v410 = vunpack.c.l.b16 %v378
        %v411 = vunpack.c.l.b16 %v379
        %v412 = vunpack.c.l.b16 %v380
        %v413 = vunpack.c.l.b16 %v381
        %v414 = vunpack.c.l.b16 %v382
        %v415 = vunpack.c.l.b16 %v383
        %v416 = vunpack.c.l.b16 %v384
        %v417 = vunpack.c.l.b16 %v385
        %v418 = vunpack.c.l.b16 %v386
        %v419 = vpack.c.b16 %v404, %v403
        %v420 = vpack.c.b16 %v406, %v405
        %v421 = vpack.c.b16 %v408, %v407
        %v422 = vpack.c.b16 %v410, %v409
        %v423 = vpack.c.b16 %v412, %v411
        %v424 = vpack.c.b16 %v414, %v413
        %v425 = vpack.c.b16 %v416, %v415
        %v426 = vpack.c.b16 %v418, %v417
        %435 = vmatprep.subr.bf16.mxu0 0
        %436 = vmatpush1.bf16.msra.mxu0 %v426
        %437 = vmatprep.subr.bf16.mxu0 0
        %438 = vmatpush1.bf16.msra.mxu0 %v425
        %439 = vmatprep.subr.bf16.mxu0 0
        %440 = vmatpush1.bf16.msra.mxu0 %v424
        %441 = vmatprep.subr.bf16.mxu0 0
        %442 = vmatpush1.bf16.msra.mxu0 %v423
        %443 = vmatprep.subr.bf16.mxu0 0
        %444 = vmatpush1.bf16.msra.mxu0 %v422
        %445 = vmatprep.subr.bf16.mxu0 0
        %446 = vmatpush1.bf16.msra.mxu0 %v421
        %447 = vmatprep.subr.bf16.mxu0 0
        %448 = vmatpush1.bf16.msra.mxu0 %v420
        %449 = vmatprep.subr.bf16.mxu0 0
        %450 = vmatpush1.bf16.msra.mxu0 %v419
        %451 = vmatprep.subr.bf16.mxu0 0
        %452 = vmatpush2.bf16.msra.mxu0 0
        %453 = vmatprep.subr.bf16.mxu0 0
        %454 = vmatpush2.bf16.msra.mxu0 0
        %455 = vmatprep.subr.bf16.mxu0 0
        %456 = vmatpush2.bf16.msra.mxu0 0
        %457 = vmatprep.subr.bf16.mxu0 0
        %458 = vmatpush2.bf16.msra.mxu0 0
        %459 = vmatprep.subr.bf16.mxu0 0
        %460 = vmatpush2.bf16.msra.mxu0 0
        %461 = vmatprep.subr.bf16.mxu0 0
        %462 = vmatpush2.bf16.msra.mxu0 0
        %463 = vmatprep.subr.bf16.mxu0 0
        %464 = vmatpush2.bf16.msra.mxu0 0
        %465 = vmatprep.subr.bf16.mxu0 0
        %466 = vmatpush2.bf16.msra.mxu0 0
        %467 = vmatprep.mubr.bf16.mxu0 0
        %468 = vmatmul.mubr.bf16.gmra.mxu0 %v370
        %v469 = vpop.f32.mrf.mxu0
        %v470 = vadd.f32 0.0, %v469
        %v471 = vpop.f32.mrf.mxu0
        %v472 = vpop.f32.mrf.mxu0
        %v473 = vpop.f32.mrf.mxu0
        %474 = vdwg.mxu0
        %v475 = vlaneseq
        %v476 = vand.u32 %v475, 127
        %v477 = vld [vmem:[%s277] sm:$0xff]
        %s478 = smul.u32 %s27, 128
        %v479 = vstv %s478
        %v480 = vsub.s32 %v477, %v479
        %481 = vset.pattern.permute.xlu0 0
        %482 = vperm.xlu0 %481, %v480
        %v483 = vpop.permute.xlu0 %482
        %vm484 = vcmp.eq.s32.totalorder %v476, %v483
        %v485 = vmul.f32 %v470, 30.0
        %v486 = vsub.f32 %v485, 12.0
        %v487 = vsel %vm484, %v486, %v485
        %488 = vst [vmem:[%s269] sm:$0xff] %v487
        %s489 = sand.u32 %s143, 1
        %s490 = scalar_lea.sflag [#allocation5], %s489
        %s491 = sand.u32 %s143, 1
        %s492 = smul.addr %s491, 8
        %s493 = scalar_lea.vmem [#allocation8], %s492
        // Predicated region
        $region49: #{tpu_custom_call.1} parent=35 // pred_check
          %p494 = pneg %p153
        $region50: #{tpu_custom_call.1} parent=35 // pred_check_branch
          %496 = sbr.rel (%p494) target = $region52
        $region51: #{tpu_custom_call.1} parent=35 // pred_region
          %s498 = ssub.s32 128, 128
          %499 = vsyncadd %s490, %s498
          %s500 = smul.addr %s26, 2
          %s501 = sadd.s32 %s27, %s500
          %s502 = smul.addr %s501, 128
          %s503 = scalar_lea.hbm %s4, %s502
          %s505 = sshll.u32 %s493, 4
          %s506 = int_to_ptr.vmem [resolvable:$true] %s505
          %508 = dma.vmem_to_hbm [thread:$0]  %s506, 128, %s503, %s490
        $region52: #{tpu_custom_call.1} parent=35 // pred_fallthru
          _
      $region36: #{tpu_custom_call.1} parent=5 // pred_fallthru
        _
      %p509 = scmp.le.s32.totalorder 2, %s17
      // Predicated region
      $region53: #{tpu_custom_call.1} parent=5 // pred_check
        %p510 = pneg %p509
      $region54: #{tpu_custom_call.1} parent=5 // pred_check_branch
        %512 = sbr.rel (%p510) target = $region56
      $region55: #{tpu_custom_call.1} parent=5 // pred_region
        %s513 = ssub.s32 %s17, 2
        // Predicated region
        $region57: #{tpu_custom_call.1} parent=55 // pred_check
          %p514 = pneg %p159
        $region58: #{tpu_custom_call.1} parent=55 // pred_check_branch
          %516 = sbr.rel (%p514) target = $region60
        $region59: #{tpu_custom_call.1} parent=55 // pred_region
          %s517 = sand.u32 %s144, 1
          %s518 = scalar_lea.sflag [#allocation5], %s517
          %s519 = sand.u32 %s144, 1
          %s520 = smul.addr %s519, 8
          %s521 = scalar_lea.vmem [#allocation8], %s520
          %522 = dma.done %s518, 128
        $region60: #{tpu_custom_call.1} parent=55 // pred_fallthru
          _
      $region56: #{tpu_custom_call.1} parent=5 // pred_fallthru
        _
    $region6: #{tpu_custom_call.1} parent=1 // loop_footer
      %s21 = sadd.s32 1, %s17
    $region7: #{tpu_custom_call.1} parent=1 // loop_footer_branch
      %16 = sbr.rel target = $region3
    $region8: #{tpu_custom_call.1} parent=1 // loop_exit
      _
    %523 = vsyncpa [#allocation4], 1
    %s524 = scalar_lea.sflag [#allocation4], 1
    %525 = vsyncpa %s524, 1
    %526 = vsyncpa [#allocation7], 1
    %s527 = scalar_lea.sflag [#allocation7], 1
    %528 = vsyncpa %s527, 1
    %529 = vsyncpa [#allocation5], 1
    %s530 = scalar_lea.sflag [#allocation5], 1
    %531 = vsyncpa %s530, 1

</llo_original>
